<compile_context>
chip_gen: v7x
topology: tpu7x:2x2x1
jax: 0.10.0
libtpu: 0.0.40
codegen_flags: <defaults>
</compile_context>

<pallas_src>
import jax
import jax.numpy as jnp
from jax.experimental import pallas as pl
from jax.experimental.pallas import tpu as pltpu


def _round_up(x, m):
    return ((x + m - 1) // m) * m


def prepare_qus_embedding_table(table):
    """One-time init: pad the vocab axis to a multiple of 128 and split the f32
    table into three bf16 planes whose sum reconstructs every row bit-exactly
    (hi + mid + lo == row; 8+8+8 mantissa bits cover f32's 24).  Hoisting the
    pad + split here keeps the per-call path free of table copies."""
    table = jnp.asarray(table, jnp.float32)
    v, d = table.shape
    v_pad = _round_up(v, 128)
    if v_pad != v:
        # Padded rows are all-zero and never selected, preserving padding_idx
        # semantics.
        table = jnp.pad(table, ((0, v_pad - v), (0, 0)))
    hi = table.astype(jnp.bfloat16)
    r1 = table - hi.astype(jnp.float32)                       # exact in f32
    mid = r1.astype(jnp.bfloat16)
    lo = (r1 - mid.astype(jnp.float32)).astype(jnp.bfloat16)  # exact residual
    return hi, mid, lo


def _gather_onehot_kernel(idx_ref, hi_ref, mid_ref, lo_ref, out_ref):
    # idx_ref:        (TM, 1)    int32  token ids for this tile
    # hi/mid/lo_ref:  (Vpad, D)  bf16   split embedding table (VMEM resident)
    # out_ref:        (TM, D)    f32    gathered embeddings (lane-dense tile)
    idx = idx_ref[...]                                    # (TM, 1)
    tm = idx.shape[0]
    v_pad = hi_ref.shape[0]
    col = jax.lax.broadcasted_iota(jnp.int32, (tm, v_pad), 1)
    # One-hot built directly in bf16 (0/1 are exact).  Out-of-range / negative
    # ids match nothing and yield an all-zero row (PyTorch would raise).
    one_hot = (col == idx).astype(jnp.bfloat16)           # (TM, Vpad)
    # 3 DEFAULT-precision MXU passes; the one-hot selects exactly one
    # (hi, mid, lo) triple per token and the f32 accumulation reconstructs the
    # original f32 row bit-exactly.
    acc = jnp.dot(one_hot, hi_ref[...], preferred_element_type=jnp.float32)
    acc = acc + jnp.dot(one_hot, mid_ref[...], preferred_element_type=jnp.float32)
    acc = acc + jnp.dot(one_hot, lo_ref[...], preferred_element_type=jnp.float32)
    out_ref[...] = acc.astype(out_ref.dtype)


def qus_embedding_map(qus, table_planes, *, max_token_tile=256):
    """Embedding lookup: (B, S) int32 ids -> (B, S, D) f32 embeddings.

    `table_planes` is the (hi, mid, lo) tuple from prepare_qus_embedding_table
    (built once at module init)."""
    hi, mid, lo = table_planes
    v_pad, d = hi.shape
    b, s = qus.shape
    n = b * s

    # Token tile: sublane-aligned; grow toward 256 for large batches (MXU row
    # width on v6e/v7x) and force >= 2 grid steps when there is enough work so
    # the "parallel" token axis can split across v7x's two TensorCores.
    n_pad = _round_up(n, 8)
    tm = min(max_token_tile, n_pad)
    if n_pad // tm < 2 and n_pad >= 128:
        tm = max(8, _round_up(n_pad // 2, 8))
    n_pad = _round_up(n_pad, tm)
    grid = n_pad // tm

    flat_idx = qus.reshape(-1).astype(jnp.int32)
    if n_pad != n:
        flat_idx = jnp.pad(flat_idx, (0, n_pad - n))  # pad ids gather row 0; sliced off
    idx2d = flat_idx.reshape(n_pad, 1)

    table_bytes = 3 * v_pad * d * 2                    # hi/mid/lo, single-buffered
    io_bytes = 2 * (tm * 4 + tm * d * 4)               # double-buffered idx/out tiles
    work_bytes = tm * v_pad * 2 + tm * d * 4           # one-hot + f32 accumulator
    vmem_limit = min(max(2 * (table_bytes + io_bytes + work_bytes), 8 << 20), 64 << 20)

    cost = pl.CostEstimate(
        flops=2 * 3 * n_pad * v_pad * d,
        transcendentals=0,
        bytes_accessed=table_bytes + n_pad * 4 + n_pad * d * 4,
    )

    # Constant index_map -> single-buffer the resident table planes
    # (double-buffering would only double their VMEM footprint).
    def table_spec():
        return pl.BlockSpec((v_pad, d), lambda i: (0, 0),
                            pipeline_mode=pl.Buffered(1))

    out = pl.pallas_call(
        _gather_onehot_kernel,
        out_shape=jax.ShapeDtypeStruct((n_pad, d), jnp.float32),
        grid_spec=pltpu.PrefetchScalarGridSpec(
            num_scalar_prefetch=0,
            grid=(grid,),
            in_specs=[
                pl.BlockSpec((tm, 1), lambda i: (i, 0)),   # token-id tile
                table_spec(), table_spec(), table_spec(),
            ],
            out_specs=pl.BlockSpec((tm, d), lambda i: (i, 0)),
        ),
        compiler_params=pltpu.CompilerParams(
            dimension_semantics=("parallel",),
            vmem_limit_bytes=vmem_limit,
        ),
        cost_estimate=cost,
    )(idx2d, hi, mid, lo)

    return out[:n].reshape(b, s, d)


if __name__ == "__main__":
    key = jax.random.PRNGKey(0)
    word_size = 300        # vocab size (ntoken); padding index = word_size
    embedding_dim = 128    # GloVe-like embedding dim (lane-aligned)
    B, S = 2, 8            # batch of questions, sequence length

    k_emb, k_idx = jax.random.split(key)
    # Deterministic stand-in for the GloVe-initialized rows.
    glove_rows = jax.random.normal(
        k_emb, (word_size, embedding_dim), dtype=jnp.float32)
    # Padding row (index word_size) is all zeros, as in nn.Embedding(padding_idx=...).
    table = jnp.concatenate(
        [glove_rows, jnp.zeros((1, embedding_dim), jnp.float32)], axis=0)

    # Question token ids, including possible padding index.
    qus = jax.random.randint(k_idx, (B, S), 0, word_size + 1, dtype=jnp.int32)

    # One-time table prep (analogue of init_embedding), then the forward pass.
    table_planes = prepare_qus_embedding_table(table)
    out = qus_embedding_map(qus, table_planes)
    out = jax.block_until_ready(out)

    # Reference: plain JAX embedding lookup.  Zero-tolerance comparison: the
    # bf16 hi/mid/lo split + f32 accumulation must reproduce rows bit-exactly.
    ref = table[qus]
    assert out.shape == (B, S, embedding_dim)
    assert out.dtype == jnp.float32
    assert jnp.array_equal(out, ref), float(jnp.max(jnp.abs(out - ref)))
    print("KERNEL_OK")
</pallas_src>

<mosaic_0001>
module attributes {stable_mosaic.version = 11 : i64} {
  func.func @_gather_onehot_kernel(%arg0: i32, %arg1: memref<16x1xi32, #tpu.memory_space<vmem>>, %arg2: memref<384x128xbf16, #tpu.memory_space<vmem>>, %arg3: memref<384x128xbf16, #tpu.memory_space<vmem>>, %arg4: memref<384x128xbf16, #tpu.memory_space<vmem>>, %arg5: memref<16x128xf32, #tpu.memory_space<vmem>>) attributes {dimension_semantics = [#tpu.dimension_semantics<parallel>], iteration_bounds = array<i64: 1>, scalar_prefetch = 0 : i64, scratch_operands = 0 : i64, tpu.core_type = #tpu.core_type<tc>, window_params = [{transform_indices = @transform_0, window_bounds = array<i64: 16, 1>}, {pipeline_mode = #tpu.pipeline_mode<synchronous>, transform_indices = @transform_1, window_bounds = array<i64: 384, 128>}, {pipeline_mode = #tpu.pipeline_mode<synchronous>, transform_indices = @transform_2, window_bounds = array<i64: 384, 128>}, {pipeline_mode = #tpu.pipeline_mode<synchronous>, transform_indices = @transform_3, window_bounds = array<i64: 384, 128>}, {transform_indices = @transform_4, window_bounds = array<i64: 16, 128>}]} {
    %c0 = arith.constant 0 : index
    %c0_0 = arith.constant 0 : index
    %0 = vector.load %arg1[%c0, %c0_0] : memref<16x1xi32, #tpu.memory_space<vmem>>, vector<16x1xi32>
    %1 = tpu.iota {dimensions = array<i32: 1>} : vector<16x384xi32>
    %2 = vector.broadcast %0 : vector<16x1xi32> to vector<16x384xi32>
    %3 = arith.cmpi eq, %1, %2 : vector<16x384xi32>
    %4 = arith.extui %3 : vector<16x384xi1> to vector<16x384xi32>
    %5 = arith.sitofp %4 : vector<16x384xi32> to vector<16x384xf32>
    %6 = arith.truncf %5 : vector<16x384xf32> to vector<16x384xbf16>
    %c0_1 = arith.constant 0 : index
    %c0_2 = arith.constant 0 : index
    %7 = vector.load %arg2[%c0_1, %c0_2] : memref<384x128xbf16, #tpu.memory_space<vmem>>, vector<384x128xbf16>
    %cst = arith.constant dense<0.000000e+00> : vector<16x128xf32>
    %8 = tpu.matmul %6, %7, %cst {dimension_numbers = #tpu.dot_dimension_numbers<[1], [0], [0], [1], [0, 0, 1, 1], [], []>} : vector<16x384xbf16>, vector<384x128xbf16>, vector<16x128xf32> -> vector<16x128xf32>
    %c0_3 = arith.constant 0 : index
    %c0_4 = arith.constant 0 : index
    %9 = vector.load %arg3[%c0_3, %c0_4] : memref<384x128xbf16, #tpu.memory_space<vmem>>, vector<384x128xbf16>
    %cst_5 = arith.constant dense<0.000000e+00> : vector<16x128xf32>
    %10 = tpu.matmul %6, %9, %cst_5 {dimension_numbers = #tpu.dot_dimension_numbers<[1], [0], [0], [1], [0, 0, 1, 1], [], []>} : vector<16x384xbf16>, vector<384x128xbf16>, vector<16x128xf32> -> vector<16x128xf32>
    %11 = arith.addf %8, %10 : vector<16x128xf32>
    %c0_6 = arith.constant 0 : index
    %c0_7 = arith.constant 0 : index
    %12 = vector.load %arg4[%c0_6, %c0_7] : memref<384x128xbf16, #tpu.memory_space<vmem>>, vector<384x128xbf16>
    %cst_8 = arith.constant dense<0.000000e+00> : vector<16x128xf32>
    %13 = tpu.matmul %6, %12, %cst_8 {dimension_numbers = #tpu.dot_dimension_numbers<[1], [0], [0], [1], [0, 0, 1, 1], [], []>} : vector<16x384xbf16>, vector<384x128xbf16>, vector<16x128xf32> -> vector<16x128xf32>
    %14 = arith.addf %11, %13 : vector<16x128xf32>
    %c0_9 = arith.constant 0 : index
    %c0_10 = arith.constant 0 : index
    %15 = vector.load %arg5[%c0_9, %c0_10] : memref<16x128xf32, #tpu.memory_space<vmem>>, vector<16x128xf32>
    tpu.vector_store %arg5[%c0_9, %c0_10], %14 {strides = array<i32>} : memref<16x128xf32, #tpu.memory_space<vmem>>, vector<16x128xf32>,
    return
  }
  func.func @transform_0(%arg0: i32) -> (i32, i32) {
    %c0_i32 = arith.constant 0 : i32
    %c0_i32_0 = arith.constant 0 : i32
    return %arg0, %c0_i32 : i32, i32
  }
  func.func @transform_1(%arg0: i32) -> (i32, i32) {
    %c0_i32 = arith.constant 0 : i32
    %c0_i32_0 = arith.constant 0 : i32
    %c0_i32_1 = arith.constant 0 : i32
    return %c0_i32, %c0_i32_0 : i32, i32
  }
  func.func @transform_2(%arg0: i32) -> (i32, i32) {
    %c0_i32 = arith.constant 0 : i32
    %c0_i32_0 = arith.constant 0 : i32
    %c0_i32_1 = arith.constant 0 : i32
    return %c0_i32, %c0_i32_0 : i32, i32
  }
  func.func @transform_3(%arg0: i32) -> (i32, i32) {
    %c0_i32 = arith.constant 0 : i32
    %c0_i32_0 = arith.constant 0 : i32
    %c0_i32_1 = arith.constant 0 : i32
    return %c0_i32, %c0_i32_0 : i32, i32
  }
  func.func @transform_4(%arg0: i32) -> (i32, i32) {
    %c0_i32 = arith.constant 0 : i32
    %c0_i32_0 = arith.constant 0 : i32
    return %arg0, %c0_i32 : i32, i32
  }
}

</mosaic_0001>

<llo_original>
// kernel: tpu_custom_call.1
$region0: #{tpu_custom_call.1}
  #allocation0 [shape = 'u32[]', space=smem, size = 0x4, offset = 0x4, fixed_abs, tag = 'smem constant byte address 0x4 - core index']
  #allocation1 [shape = 'u32[144,128]{1,0:T(1,128)}', space=vmem, size = 0x12000, scoped, tag = 'internal scratch']
  %s0 = inlined_call_operand.vmem [shape: s32[16,1], index: 0, kind: input, shape index: {}]
  %s1 = inlined_call_operand.hbm [shape: bf16[384,128], index: 1, kind: input, shape index: {}]
  %s2 = inlined_call_operand.hbm [shape: bf16[384,128], index: 2, kind: input, shape index: {}]
  %s3 = inlined_call_operand.hbm [shape: bf16[384,128], index: 3, kind: input, shape index: {}]
  %s4 = inlined_call_operand.hbm [shape: f32[16,128], index: 4, kind: output, shape index: {}]
  %s5 = sld [smem:[#allocation0]]
  $region38: #{tpu_custom_call.1} parent=0
    _
  %s7 = ssub.s32 1, %s5
  %s8 = scalar_select 0, %s7, %s5
  $region1: #{tpu_custom_call.1} parent=0
    #allocation2 [shape = 'u8[98304]{0}', space=vmem, size = 0x18000, scoped, tag = 'input window, operand 1, single buffered']
    #allocation3 [shape = 's32[1]{0}', space=sflag, size = 0x4, scoped, tag = 'scoped memory for tpu_custom_call.1']
    #allocation4 [shape = 's32[1]{0}', space=sflag, size = 0x4, scoped, tag = 'scoped memory for tpu_custom_call.1']
    #allocation5 [shape = 'u8[98304]{0}', space=vmem, size = 0x18000, scoped, tag = 'input window, operand 2, single buffered']
    #allocation6 [shape = 's32[1]{0}', space=sflag, size = 0x4, scoped, tag = 'scoped memory for tpu_custom_call.1']
    #allocation7 [shape = 'u8[98304]{0}', space=vmem, size = 0x18000, scoped, tag = 'input window, operand 3, single buffered']
    #allocation8 [shape = 'u8[8192]{0}', space=vmem, size = 0x2000, scoped, tag = 'output window, operand 0, single buffered']
    %9 = vsyncpa [#allocation3], 0
    %10 = vsyncpa [#allocation6], 0
    %11 = vsyncpa [#allocation4], 0
    // Predicated region
    $region2: #{tpu_custom_call.1} parent=1 // pred_check
      _
    $region3: #{tpu_custom_call.1} parent=1 // pred_check_branch
      %13 = sbr.rel (0) target = $region5
    $region4: #{tpu_custom_call.1} parent=1 // pred_region
      _
    $region5: #{tpu_custom_call.1} parent=1 // pred_fallthru
      _
    // Predicated region
    $region6: #{tpu_custom_call.1} parent=1 // pred_check
      _
    $region7: #{tpu_custom_call.1} parent=1 // pred_check_branch
      %15 = sbr.rel (0) target = $region9
    $region8: #{tpu_custom_call.1} parent=1 // pred_region
      %s17 = ssub.s32 3072, 3072
      %18 = vsyncadd [#allocation3], %s17
      %s19 = sshll.u32 [#allocation2], 4
      %s20 = int_to_ptr.vmem [resolvable:$true] %s19
      %25 = dma.hbm_to_vmem [thread:$0]  %s1, 3072, %s20, [#allocation3], 64, 64, 4
    $region9: #{tpu_custom_call.1} parent=1 // pred_fallthru
      _
    // Predicated region
    $region10: #{tpu_custom_call.1} parent=1 // pred_check
      _
    $region11: #{tpu_custom_call.1} parent=1 // pred_check_branch
      %27 = sbr.rel (0) target = $region13
    $region12: #{tpu_custom_call.1} parent=1 // pred_region
      %s29 = ssub.s32 3072, 3072
      %30 = vsyncadd [#allocation6], %s29
      %s31 = sshll.u32 [#allocation5], 4
      %s32 = int_to_ptr.vmem [resolvable:$true] %s31
      %37 = dma.hbm_to_vmem [thread:$0]  %s2, 3072, %s32, [#allocation6], 64, 64, 4
    $region13: #{tpu_custom_call.1} parent=1 // pred_fallthru
      _
    // Predicated region
    $region14: #{tpu_custom_call.1} parent=1 // pred_check
      _
    $region15: #{tpu_custom_call.1} parent=1 // pred_check_branch
      %39 = sbr.rel (0) target = $region17
    $region16: #{tpu_custom_call.1} parent=1 // pred_region
      %s41 = ssub.s32 3072, 3072
      %42 = vsyncadd [#allocation6], %s41
      %s43 = sshll.u32 [#allocation7], 4
      %s44 = int_to_ptr.vmem [resolvable:$true] %s43
      %49 = dma.hbm_to_vmem [thread:$0]  %s3, 3072, %s44, [#allocation6], 64, 64, 4
    $region17: #{tpu_custom_call.1} parent=1 // pred_fallthru
      _
    // Predicated region
    $region18: #{tpu_custom_call.1} parent=1 // pred_check
      _
    $region19: #{tpu_custom_call.1} parent=1 // pred_check_branch
      %51 = sbr.rel (0) target = $region21
    $region20: #{tpu_custom_call.1} parent=1 // pred_region
      %52 = dma.done [#allocation3], 3072
    $region21: #{tpu_custom_call.1} parent=1 // pred_fallthru
      _
    // Predicated region
    $region22: #{tpu_custom_call.1} parent=1 // pred_check
      _
    $region23: #{tpu_custom_call.1} parent=1 // pred_check_branch
      %54 = sbr.rel (0) target = $region25
    $region24: #{tpu_custom_call.1} parent=1 // pred_region
      %55 = dma.done [#allocation6], 3072
    $region25: #{tpu_custom_call.1} parent=1 // pred_fallthru
      _
    // Predicated region
    $region26: #{tpu_custom_call.1} parent=1 // pred_check
      _
    $region27: #{tpu_custom_call.1} parent=1 // pred_check_branch
      %57 = sbr.rel (0) target = $region29
    $region28: #{tpu_custom_call.1} parent=1 // pred_region
      %58 = dma.done [#allocation6], 3072
    $region29: #{tpu_custom_call.1} parent=1 // pred_fallthru
      _
    %v60 = vld [vmem:[%s0] sm:$0xff]
    %v61 = vld [vmem:[%s0 + $0x8] sm:$0xff]
    %v62 = vlaneseq
    %v63 = vand.u32 %v62, 127
    %v64 = vadd.s32 %v63, 128
    %v65 = vadd.s32 %v63, 256
    %66 = vset.pattern.permute.xlu0 0
    %67 = vperm.xlu0 %66, %v60
    %v68 = vpop.permute.xlu0 %67
    %69 = vset.pattern.permute.xlu0 0
    %70 = vperm.xlu0 %69, %v61
    %v71 = vpop.permute.xlu0 %70
    %vm72 = vcmp.eq.s32.totalorder %v63, %v68
    %vm73 = vcmp.eq.s32.totalorder %v64, %v68
    %vm74 = vcmp.eq.s32.totalorder %v65, %v68
    %vm75 = vcmp.eq.s32.totalorder %v63, %v71
    %vm76 = vcmp.eq.s32.totalorder %v64, %v71
    %vm77 = vcmp.eq.s32.totalorder %v65, %v71
    %v78 = vsel %vm72, 1, 0
    %v79 = vsel %vm73, 1, 0
    %v80 = vsel %vm74, 1, 0
    %v81 = vsel %vm75, 1, 0
    %v82 = vsel %vm76, 1, 0
    %v83 = vsel %vm77, 1, 0
    %v84 = vcvt.s32.f32 %v78
    %v85 = vcvt.s32.f32 %v79
    %v86 = vcvt.s32.f32 %v80
    %v87 = vcvt.s32.f32 %v81
    %v88 = vcvt.s32.f32 %v82
    %v89 = vcvt.s32.f32 %v83
    %v90 = vpack.c.bf16 %v87, %v84
    %v91 = vpack.c.bf16 %v88, %v85
    %v92 = vpack.c.bf16 %v89, %v86
    %v93 = vld [vmem:[#allocation2] sm:$0xf]
    %v94 = vld [vmem:[#allocation2 + $0x4] sm:$0xf]
    %v95 = vld [vmem:[#allocation2 + $0x8] sm:$0xf]
    %v96 = vld [vmem:[#allocation2 + $0xc] sm:$0xf]
    %v97 = vld [vmem:[#allocation2 + $0x10] sm:$0xf]
    %v98 = vld [vmem:[#allocation2 + $0x14] sm:$0xf]
    %v99 = vld [vmem:[#allocation2 + $0x18] sm:$0xf]
    %v100 = vld [vmem:[#allocation2 + $0x1c] sm:$0xf]
    %v101 = vld [vmem:[#allocation2 + $0x20] sm:$0xf]
    %v102 = vld [vmem:[#allocation2 + $0x24] sm:$0xf]
    %v103 = vld [vmem:[#allocation2 + $0x28] sm:$0xf]
    %v104 = vld [vmem:[#allocation2 + $0x2c] sm:$0xf]
    %v105 = vld [vmem:[#allocation2 + $0x30] sm:$0xf]
    %v106 = vld [vmem:[#allocation2 + $0x34] sm:$0xf]
    %v107 = vld [vmem:[#allocation2 + $0x38] sm:$0xf]
    %v108 = vld [vmem:[#allocation2 + $0x3c] sm:$0xf]
    %v109 = vld [vmem:[#allocation2 + $0x40] sm:$0xf]
    %v110 = vld [vmem:[#allocation2 + $0x44] sm:$0xf]
    %v111 = vld [vmem:[#allocation2 + $0x48] sm:$0xf]
    %v112 = vld [vmem:[#allocation2 + $0x4c] sm:$0xf]
    %v113 = vld [vmem:[#allocation2 + $0x50] sm:$0xf]
    %v114 = vld [vmem:[#allocation2 + $0x54] sm:$0xf]
    %v115 = vld [vmem:[#allocation2 + $0x58] sm:$0xf]
    %v116 = vld [vmem:[#allocation2 + $0x5c] sm:$0xf]
    %v117 = vld [vmem:[#allocation2 + $0x60] sm:$0xf]
    %v118 = vld [vmem:[#allocation2 + $0x64] sm:$0xf]
    %v119 = vld [vmem:[#allocation2 + $0x68] sm:$0xf]
    %v120 = vld [vmem:[#allocation2 + $0x6c] sm:$0xf]
    %v121 = vld [vmem:[#allocation2 + $0x70] sm:$0xf]
    %v122 = vld [vmem:[#allocation2 + $0x74] sm:$0xf]
    %v123 = vld [vmem:[#allocation2 + $0x78] sm:$0xf]
    %v124 = vld [vmem:[#allocation2 + $0x7c] sm:$0xf]
    %v125 = vld [vmem:[#allocation2 + $0x80] sm:$0xf]
    %v126 = vld [vmem:[#allocation2 + $0x84] sm:$0xf]
    %v127 = vld [vmem:[#allocation2 + $0x88] sm:$0xf]
    %v128 = vld [vmem:[#allocation2 + $0x8c] sm:$0xf]
    %v129 = vld [vmem:[#allocation2 + $0x90] sm:$0xf]
    %v130 = vld [vmem:[#allocation2 + $0x94] sm:$0xf]
    %v131 = vld [vmem:[#allocation2 + $0x98] sm:$0xf]
    %v132 = vld [vmem:[#allocation2 + $0x9c] sm:$0xf]
    %v133 = vld [vmem:[#allocation2 + $0xa0] sm:$0xf]
    %v134 = vld [vmem:[#allocation2 + $0xa4] sm:$0xf]
    %v135 = vld [vmem:[#allocation2 + $0xa8] sm:$0xf]
    %v136 = vld [vmem:[#allocation2 + $0xac] sm:$0xf]
    %v137 = vld [vmem:[#allocation2 + $0xb0] sm:$0xf]
    %v138 = vld [vmem:[#allocation2 + $0xb4] sm:$0xf]
    %v139 = vld [vmem:[#allocation2 + $0xb8] sm:$0xf]
    %v140 = vld [vmem:[#allocation2 + $0xbc] sm:$0xf]
    %v141 = vld [vmem:[#allocation5] sm:$0xf]
    %v142 = vld [vmem:[#allocation5 + $0x4] sm:$0xf]
    %v143 = vld [vmem:[#allocation5 + $0x8] sm:$0xf]
    %v144 = vld [vmem:[#allocation5 + $0xc] sm:$0xf]
    %v145 = vld [vmem:[#allocation5 + $0x10] sm:$0xf]
    %v146 = vld [vmem:[#allocation5 + $0x14] sm:$0xf]
    %v147 = vld [vmem:[#allocation5 + $0x18] sm:$0xf]
    %v148 = vld [vmem:[#allocation5 + $0x1c] sm:$0xf]
    %v149 = vld [vmem:[#allocation5 + $0x20] sm:$0xf]
    %v150 = vld [vmem:[#allocation5 + $0x24] sm:$0xf]
    %v151 = vld [vmem:[#allocation5 + $0x28] sm:$0xf]
    %v152 = vld [vmem:[#allocation5 + $0x2c] sm:$0xf]
    %v153 = vld [vmem:[#allocation5 + $0x30] sm:$0xf]
    %v154 = vld [vmem:[#allocation5 + $0x34] sm:$0xf]
    %v155 = vld [vmem:[#allocation5 + $0x38] sm:$0xf]
    %v156 = vld [vmem:[#allocation5 + $0x3c] sm:$0xf]
    %v157 = vld [vmem:[#allocation5 + $0x40] sm:$0xf]
    %v158 = vld [vmem:[#allocation5 + $0x44] sm:$0xf]
    %v159 = vld [vmem:[#allocation5 + $0x48] sm:$0xf]
    %v160 = vld [vmem:[#allocation5 + $0x4c] sm:$0xf]
    %v161 = vld [vmem:[#allocation5 + $0x50] sm:$0xf]
    %v162 = vld [vmem:[#allocation5 + $0x54] sm:$0xf]
    %v163 = vld [vmem:[#allocation5 + $0x58] sm:$0xf]
    %v164 = vld [vmem:[#allocation5 + $0x5c] sm:$0xf]
    %v165 = vld [vmem:[#allocation5 + $0x60] sm:$0xf]
    %v166 = vld [vmem:[#allocation5 + $0x64] sm:$0xf]
    %v167 = vld [vmem:[#allocation5 + $0x68] sm:$0xf]
    %v168 = vld [vmem:[#allocation5 + $0x6c] sm:$0xf]
    %v169 = vld [vmem:[#allocation5 + $0x70] sm:$0xf]
    %v170 = vld [vmem:[#allocation5 + $0x74] sm:$0xf]
    %v171 = vld [vmem:[#allocation5 + $0x78] sm:$0xf]
    %v172 = vld [vmem:[#allocation5 + $0x7c] sm:$0xf]
    %v173 = vld [vmem:[#allocation5 + $0x80] sm:$0xf]
    %v174 = vld [vmem:[#allocation5 + $0x84] sm:$0xf]
    %v175 = vld [vmem:[#allocation5 + $0x88] sm:$0xf]
    %v176 = vld [vmem:[#allocation5 + $0x8c] sm:$0xf]
    %v177 = vld [vmem:[#allocation5 + $0x90] sm:$0xf]
    %v178 = vld [vmem:[#allocation5 + $0x94] sm:$0xf]
    %v179 = vld [vmem:[#allocation5 + $0x98] sm:$0xf]
    %v180 = vld [vmem:[#allocation5 + $0x9c] sm:$0xf]
    %v181 = vld [vmem:[#allocation5 + $0xa0] sm:$0xf]
    %v182 = vld [vmem:[#allocation5 + $0xa4] sm:$0xf]
    %v183 = vld [vmem:[#allocation5 + $0xa8] sm:$0xf]
    %v184 = vld [vmem:[#allocation5 + $0xac] sm:$0xf]
    %v185 = vld [vmem:[#allocation5 + $0xb0] sm:$0xf]
    %v186 = vld [vmem:[#allocation5 + $0xb4] sm:$0xf]
    %v187 = vld [vmem:[#allocation5 + $0xb8] sm:$0xf]
    %v188 = vld [vmem:[#allocation5 + $0xbc] sm:$0xf]
    %v237 = vunpack.c.l.b16 %v141
    %v238 = vunpack.c.l.b16 %v142
    %v239 = vunpack.c.l.b16 %v143
    %v240 = vunpack.c.l.b16 %v144
    %v241 = vunpack.c.l.b16 %v145
    %v242 = vunpack.c.l.b16 %v146
    %v243 = vunpack.c.l.b16 %v147
    %v244 = vunpack.c.l.b16 %v148
    %v245 = vunpack.c.l.b16 %v149
    %v246 = vunpack.c.l.b16 %v150
    %v247 = vunpack.c.l.b16 %v151
    %v248 = vunpack.c.l.b16 %v152
    %v249 = vunpack.c.l.b16 %v153
    %v250 = vunpack.c.l.b16 %v154
    %v251 = vunpack.c.l.b16 %v155
    %v252 = vunpack.c.l.b16 %v156
    %v253 = vunpack.c.l.b16 %v157
    %v254 = vunpack.c.l.b16 %v158
    %v255 = vunpack.c.l.b16 %v159
    %v256 = vunpack.c.l.b16 %v160
    %v257 = vunpack.c.l.b16 %v161
    %v258 = vunpack.c.l.b16 %v162
    %v259 = vunpack.c.l.b16 %v163
    %v260 = vunpack.c.l.b16 %v164
    %v261 = vunpack.c.l.b16 %v165
    %v262 = vunpack.c.l.b16 %v166
    %v263 = vunpack.c.l.b16 %v167
    %v264 = vunpack.c.l.b16 %v168
    %v265 = vunpack.c.l.b16 %v169
    %v266 = vunpack.c.l.b16 %v170
    %v267 = vunpack.c.l.b16 %v171
    %v268 = vunpack.c.l.b16 %v172
    %v269 = vunpack.c.l.b16 %v173
    %v270 = vunpack.c.l.b16 %v174
    %v271 = vunpack.c.l.b16 %v175
    %v272 = vunpack.c.l.b16 %v176
    %v273 = vunpack.c.l.b16 %v177
    %v274 = vunpack.c.l.b16 %v178
    %v275 = vunpack.c.l.b16 %v179
    %v276 = vunpack.c.l.b16 %v180
    %v277 = vunpack.c.l.b16 %v181
    %v278 = vunpack.c.l.b16 %v182
    %v279 = vunpack.c.l.b16 %v183
    %v280 = vunpack.c.l.b16 %v184
    %v281 = vunpack.c.l.b16 %v185
    %v282 = vunpack.c.l.b16 %v186
    %v283 = vunpack.c.l.b16 %v187
    %v284 = vunpack.c.l.b16 %v188
    %v285 = vpack.c.b16 %v238, %v237
    %v286 = vpack.c.b16 %v240, %v239
    %v287 = vpack.c.b16 %v242, %v241
    %v288 = vpack.c.b16 %v244, %v243
    %v289 = vpack.c.b16 %v246, %v245
    %v290 = vpack.c.b16 %v248, %v247
    %v291 = vpack.c.b16 %v250, %v249
    %v292 = vpack.c.b16 %v252, %v251
    %v293 = vpack.c.b16 %v254, %v253
    %v294 = vpack.c.b16 %v256, %v255
    %v295 = vpack.c.b16 %v258, %v257
    %v296 = vpack.c.b16 %v260, %v259
    %v297 = vpack.c.b16 %v262, %v261
    %v298 = vpack.c.b16 %v264, %v263
    %v299 = vpack.c.b16 %v266, %v265
    %v300 = vpack.c.b16 %v268, %v267
    %v301 = vpack.c.b16 %v270, %v269
    %v302 = vpack.c.b16 %v272, %v271
    %v303 = vpack.c.b16 %v274, %v273
    %v304 = vpack.c.b16 %v276, %v275
    %v305 = vpack.c.b16 %v278, %v277
    %v306 = vpack.c.b16 %v280, %v279
    %v307 = vpack.c.b16 %v282, %v281
    %v308 = vpack.c.b16 %v284, %v283
    %333 = vmatprep.subr.bf16.mxu0 0
    %334 = vmatpush1.bf16.msra.mxu0 %v285
    %335 = vmatprep.subr.bf16.mxu0 0
    %336 = vmatpush1.bf16.msra.mxu0 %v286
    %337 = vmatprep.subr.bf16.mxu0 0
    %338 = vmatpush1.bf16.msra.mxu0 %v287
    %339 = vmatprep.subr.bf16.mxu0 0
    %340 = vmatpush1.bf16.msra.mxu0 %v288
    %341 = vmatprep.subr.bf16.mxu0 0
    %342 = vmatpush1.bf16.msra.mxu0 %v289
    %343 = vmatprep.subr.bf16.mxu0 0
    %344 = vmatpush1.bf16.msra.mxu0 %v290
    %345 = vmatprep.subr.bf16.mxu0 0
    %346 = vmatpush1.bf16.msra.mxu0 %v291
    %347 = vmatprep.subr.bf16.mxu0 0
    %348 = vmatpush1.bf16.msra.mxu0 %v292
    %349 = vmatprep.subr.bf16.mxu0 0
    %350 = vmatpush1.bf16.msra.mxu0 %v293
    %351 = vmatprep.subr.bf16.mxu0 0
    %352 = vmatpush1.bf16.msra.mxu0 %v294
    %353 = vmatprep.subr.bf16.mxu0 0
    %354 = vmatpush1.bf16.msra.mxu0 %v295
    %355 = vmatprep.subr.bf16.mxu0 0
    %356 = vmatpush1.bf16.msra.mxu0 %v296
    %357 = vmatprep.subr.bf16.mxu0 0
    %358 = vmatpush1.bf16.msra.mxu0 %v297
    %359 = vmatprep.subr.bf16.mxu0 0
    %360 = vmatpush1.bf16.msra.mxu0 %v298
    %361 = vmatprep.subr.bf16.mxu0 0
    %362 = vmatpush1.bf16.msra.mxu0 %v299
    %363 = vmatprep.subr.bf16.mxu0 0
    %364 = vmatpush1.bf16.msra.mxu0 %v300
    %365 = vmatprep.mubr.bf16.mxu0 %v91
    %366 = vmatmul.mubr.bf16.gmra.mrb[0].mxu0 %v90
    %v367 = vpop.f32.mrb[0].mxu0
    %v368 = vadd.f32 0.0, %v367
    %v369 = vpop.f32.mrb[0].mxu0
    %v370 = vpop.f32.mrb[0].mxu0
    %v371 = vadd.f32 0.0, %v370
    %v372 = vpop.f32.mrb[0].mxu0
    %373 = vdwg.mxu0
    %374 = vmatprep.subr.bf16.mxu0 0
    %375 = vmatpush1.bf16.msra.mxu0 %v301
    %376 = vmatprep.subr.bf16.mxu0 0
    %377 = vmatpush1.bf16.msra.mxu0 %v302
    %378 = vmatprep.subr.bf16.mxu0 0
    %379 = vmatpush1.bf16.msra.mxu0 %v303
    %380 = vmatprep.subr.bf16.mxu0 0
    %381 = vmatpush1.bf16.msra.mxu0 %v304
    %382 = vmatprep.subr.bf16.mxu0 0
    %383 = vmatpush1.bf16.msra.mxu0 %v305
    %384 = vmatprep.subr.bf16.mxu0 0
    %385 = vmatpush1.bf16.msra.mxu0 %v306
    %386 = vmatprep.subr.bf16.mxu0 0
    %387 = vmatpush1.bf16.msra.mxu0 %v307
    %388 = vmatprep.subr.bf16.mxu0 0
    %389 = vmatpush1.bf16.msra.mxu0 %v308
    %390 = vmatprep.subr.bf16.mxu0 0
    %391 = vmatpush1.bf16.msra.mxu0 0
    %392 = vmatprep.subr.bf16.mxu0 0
    %393 = vmatpush1.bf16.msra.mxu0 0
    %394 = vmatprep.subr.bf16.mxu0 0
    %395 = vmatpush1.bf16.msra.mxu0 0
    %396 = vmatprep.subr.bf16.mxu0 0
    %397 = vmatpush1.bf16.msra.mxu0 0
    %398 = vmatprep.subr.bf16.mxu0 0
    %399 = vmatpush1.bf16.msra.mxu0 0
    %400 = vmatprep.subr.bf16.mxu0 0
    %401 = vmatpush1.bf16.msra.mxu0 0
    %402 = vmatprep.subr.bf16.mxu0 0
    %403 = vmatpush1.bf16.msra.mxu0 0
    %404 = vmatprep.subr.bf16.mxu0 0
    %405 = vmatpush1.bf16.msra.mxu0 0
    %406 = vmatprep.mubr.bf16.mxu0 0
    %407 = vmatmul.mubr.bf16.gmra.mrb[0].mxu0 %v92
    %v408 = vpop.f32.mrb[0].mxu0
    %v409 = vadd.f32 %v368, %v408
    %v410 = vpop.f32.mrb[0].mxu0
    %v411 = vpop.f32.mrb[0].mxu0
    %v412 = vadd.f32 %v371, %v411
    %v413 = vpop.f32.mrb[0].mxu0
    %414 = vdwg.mxu0
    %v463 = vunpack.c.l.b16 %v93
    %v464 = vunpack.c.l.b16 %v94
    %v465 = vunpack.c.l.b16 %v95
    %v466 = vunpack.c.l.b16 %v96
    %v467 = vunpack.c.l.b16 %v97
    %v468 = vunpack.c.l.b16 %v98
    %v469 = vunpack.c.l.b16 %v99
    %v470 = vunpack.c.l.b16 %v100
    %v471 = vunpack.c.l.b16 %v101
    %v472 = vunpack.c.l.b16 %v102
    %v473 = vunpack.c.l.b16 %v103
    %v474 = vunpack.c.l.b16 %v104
    %v475 = vunpack.c.l.b16 %v105
    %v476 = vunpack.c.l.b16 %v106
    %v477 = vunpack.c.l.b16 %v107
    %v478 = vunpack.c.l.b16 %v108
    %v479 = vunpack.c.l.b16 %v109
    %v480 = vunpack.c.l.b16 %v110
    %v481 = vunpack.c.l.b16 %v111
    %v482 = vunpack.c.l.b16 %v112
    %v483 = vunpack.c.l.b16 %v113
    %v484 = vunpack.c.l.b16 %v114
    %v485 = vunpack.c.l.b16 %v115
    %v486 = vunpack.c.l.b16 %v116
    %v487 = vunpack.c.l.b16 %v117
    %v488 = vunpack.c.l.b16 %v118
    %v489 = vunpack.c.l.b16 %v119
    %v490 = vunpack.c.l.b16 %v120
    %v491 = vunpack.c.l.b16 %v121
    %v492 = vunpack.c.l.b16 %v122
    %v493 = vunpack.c.l.b16 %v123
    %v494 = vunpack.c.l.b16 %v124
    %v495 = vunpack.c.l.b16 %v125
    %v496 = vunpack.c.l.b16 %v126
    %v497 = vunpack.c.l.b16 %v127
    %v498 = vunpack.c.l.b16 %v128
    %v499 = vunpack.c.l.b16 %v129
    %v500 = vunpack.c.l.b16 %v130
    %v501 = vunpack.c.l.b16 %v131
    %v502 = vunpack.c.l.b16 %v132
    %v503 = vunpack.c.l.b16 %v133
    %v504 = vunpack.c.l.b16 %v134
    %v505 = vunpack.c.l.b16 %v135
    %v506 = vunpack.c.l.b16 %v136
    %v507 = vunpack.c.l.b16 %v137
    %v508 = vunpack.c.l.b16 %v138
    %v509 = vunpack.c.l.b16 %v139
    %v510 = vunpack.c.l.b16 %v140
    %v511 = vpack.c.b16 %v464, %v463
    %v512 = vpack.c.b16 %v466, %v465
    %v513 = vpack.c.b16 %v468, %v467
    %v514 = vpack.c.b16 %v470, %v469
    %v515 = vpack.c.b16 %v472, %v471
    %v516 = vpack.c.b16 %v474, %v473
    %v517 = vpack.c.b16 %v476, %v475
    %v518 = vpack.c.b16 %v478, %v477
    %v519 = vpack.c.b16 %v480, %v479
    %v520 = vpack.c.b16 %v482, %v481
    %v521 = vpack.c.b16 %v484, %v483
    %v522 = vpack.c.b16 %v486, %v485
    %v523 = vpack.c.b16 %v488, %v487
    %v524 = vpack.c.b16 %v490, %v489
    %v525 = vpack.c.b16 %v492, %v491
    %v526 = vpack.c.b16 %v494, %v493
    %v527 = vpack.c.b16 %v496, %v495
    %v528 = vpack.c.b16 %v498, %v497
    %v529 = vpack.c.b16 %v500, %v499
    %v530 = vpack.c.b16 %v502, %v501
    %v531 = vpack.c.b16 %v504, %v503
    %v532 = vpack.c.b16 %v506, %v505
    %v533 = vpack.c.b16 %v508, %v507
    %v534 = vpack.c.b16 %v510, %v509
    %559 = vmatprep.subr.bf16.mxu0 0
    %560 = vmatpush1.bf16.msra.mxu0 %v511
    %561 = vmatprep.subr.bf16.mxu0 0
    %562 = vmatpush1.bf16.msra.mxu0 %v512
    %563 = vmatprep.subr.bf16.mxu0 0
    %564 = vmatpush1.bf16.msra.mxu0 %v513
    %565 = vmatprep.subr.bf16.mxu0 0
    %566 = vmatpush1.bf16.msra.mxu0 %v514
    %567 = vmatprep.subr.bf16.mxu0 0
    %568 = vmatpush1.bf16.msra.mxu0 %v515
    %569 = vmatprep.subr.bf16.mxu0 0
    %570 = vmatpush1.bf16.msra.mxu0 %v516
    %571 = vmatprep.subr.bf16.mxu0 0
    %572 = vmatpush1.bf16.msra.mxu0 %v517
    %573 = vmatprep.subr.bf16.mxu0 0
    %574 = vmatpush1.bf16.msra.mxu0 %v518
    %575 = vmatprep.subr.bf16.mxu0 0
    %576 = vmatpush1.bf16.msra.mxu0 %v519
    %577 = vmatprep.subr.bf16.mxu0 0
    %578 = vmatpush1.bf16.msra.mxu0 %v520
    %579 = vmatprep.subr.bf16.mxu0 0
    %580 = vmatpush1.bf16.msra.mxu0 %v521
    %581 = vmatprep.subr.bf16.mxu0 0
    %582 = vmatpush1.bf16.msra.mxu0 %v522
    %583 = vmatprep.subr.bf16.mxu0 0
    %584 = vmatpush1.bf16.msra.mxu0 %v523
    %585 = vmatprep.subr.bf16.mxu0 0
    %586 = vmatpush1.bf16.msra.mxu0 %v524
    %587 = vmatprep.subr.bf16.mxu0 0
    %588 = vmatpush1.bf16.msra.mxu0 %v525
    %589 = vmatprep.subr.bf16.mxu0 0
    %590 = vmatpush1.bf16.msra.mxu0 %v526
    %591 = vmatprep.mubr.bf16.mxu0 %v91
    %592 = vmatmul.mubr.bf16.gmra.mrb[0].mxu0 %v90
    %v593 = vpop.f32.mrb[0].mxu0
    %v594 = vadd.f32 %v409, %v593
    %v595 = vpop.f32.mrb[0].mxu0
    %v596 = vpop.f32.mrb[0].mxu0
    %v597 = vadd.f32 %v412, %v596
    %v598 = vpop.f32.mrb[0].mxu0
    %599 = vdwg.mxu0
    %600 = vmatprep.subr.bf16.mxu0 0
    %601 = vmatpush1.bf16.msra.mxu0 %v527
    %602 = vmatprep.subr.bf16.mxu0 0
    %603 = vmatpush1.bf16.msra.mxu0 %v528
    %604 = vmatprep.subr.bf16.mxu0 0
    %605 = vmatpush1.bf16.msra.mxu0 %v529
    %606 = vmatprep.subr.bf16.mxu0 0
    %607 = vmatpush1.bf16.msra.mxu0 %v530
    %608 = vmatprep.subr.bf16.mxu0 0
    %609 = vmatpush1.bf16.msra.mxu0 %v531
    %610 = vmatprep.subr.bf16.mxu0 0
    %611 = vmatpush1.bf16.msra.mxu0 %v532
    %612 = vmatprep.subr.bf16.mxu0 0
    %613 = vmatpush1.bf16.msra.mxu0 %v533
    %614 = vmatprep.subr.bf16.mxu0 0
    %615 = vmatpush1.bf16.msra.mxu0 %v534
    %616 = vmatprep.subr.bf16.mxu0 0
    %617 = vmatpush1.bf16.msra.mxu0 0
    %618 = vmatprep.subr.bf16.mxu0 0
    %619 = vmatpush1.bf16.msra.mxu0 0
    %620 = vmatprep.subr.bf16.mxu0 0
    %621 = vmatpush1.bf16.msra.mxu0 0
    %622 = vmatprep.subr.bf16.mxu0 0
    %623 = vmatpush1.bf16.msra.mxu0 0
    %624 = vmatprep.subr.bf16.mxu0 0
    %625 = vmatpush1.bf16.msra.mxu0 0
    %626 = vmatprep.subr.bf16.mxu0 0
    %627 = vmatpush1.bf16.msra.mxu0 0
    %628 = vmatprep.subr.bf16.mxu0 0
    %629 = vmatpush1.bf16.msra.mxu0 0
    %630 = vmatprep.subr.bf16.mxu0 0
    %631 = vmatpush1.bf16.msra.mxu0 0
    %632 = vmatprep.mubr.bf16.mxu0 0
    %633 = vmatmul.mubr.bf16.gmra.mrb[0].mxu0 %v92
    %v634 = vpop.f32.mrb[0].mxu0
    %v635 = vadd.f32 %v594, %v634
    %v636 = vpop.f32.mrb[0].mxu0
    %v637 = vpop.f32.mrb[0].mxu0
    %v638 = vadd.f32 %v597, %v637
    %v639 = vpop.f32.mrb[0].mxu0
    %640 = vdwg.mxu0
    %v641 = vld [vmem:[#allocation7] sm:$0xf]
    %v642 = vld [vmem:[#allocation7 + $0x4] sm:$0xf]
    %v643 = vld [vmem:[#allocation7 + $0x8] sm:$0xf]
    %v644 = vld [vmem:[#allocation7 + $0xc] sm:$0xf]
    %v645 = vld [vmem:[#allocation7 + $0x10] sm:$0xf]
    %v646 = vld [vmem:[#allocation7 + $0x14] sm:$0xf]
    %v647 = vld [vmem:[#allocation7 + $0x18] sm:$0xf]
    %v648 = vld [vmem:[#allocation7 + $0x1c] sm:$0xf]
    %v649 = vld [vmem:[#allocation7 + $0x20] sm:$0xf]
    %v650 = vld [vmem:[#allocation7 + $0x24] sm:$0xf]
    %v651 = vld [vmem:[#allocation7 + $0x28] sm:$0xf]
    %v652 = vld [vmem:[#allocation7 + $0x2c] sm:$0xf]
    %v653 = vld [vmem:[#allocation7 + $0x30] sm:$0xf]
    %v654 = vld [vmem:[#allocation7 + $0x34] sm:$0xf]
    %v655 = vld [vmem:[#allocation7 + $0x38] sm:$0xf]
    %v656 = vld [vmem:[#allocation7 + $0x3c] sm:$0xf]
    %v657 = vld [vmem:[#allocation7 + $0x40] sm:$0xf]
    %v658 = vld [vmem:[#allocation7 + $0x44] sm:$0xf]
    %v659 = vld [vmem:[#allocation7 + $0x48] sm:$0xf]
    %v660 = vld [vmem:[#allocation7 + $0x4c] sm:$0xf]
    %v661 = vld [vmem:[#allocation7 + $0x50] sm:$0xf]
    %v662 = vld [vmem:[#allocation7 + $0x54] sm:$0xf]
    %v663 = vld [vmem:[#allocation7 + $0x58] sm:$0xf]
    %v664 = vld [vmem:[#allocation7 + $0x5c] sm:$0xf]
    %v665 = vld [vmem:[#allocation7 + $0x60] sm:$0xf]
    %v666 = vld [vmem:[#allocation7 + $0x64] sm:$0xf]
    %v667 = vld [vmem:[#allocation7 + $0x68] sm:$0xf]
    %v668 = vld [vmem:[#allocation7 + $0x6c] sm:$0xf]
    %v669 = vld [vmem:[#allocation7 + $0x70] sm:$0xf]
    %v670 = vld [vmem:[#allocation7 + $0x74] sm:$0xf]
    %v671 = vld [vmem:[#allocation7 + $0x78] sm:$0xf]
    %v672 = vld [vmem:[#allocation7 + $0x7c] sm:$0xf]
    %v673 = vld [vmem:[#allocation7 + $0x80] sm:$0xf]
    %v674 = vld [vmem:[#allocation7 + $0x84] sm:$0xf]
    %v675 = vld [vmem:[#allocation7 + $0x88] sm:$0xf]
    %v676 = vld [vmem:[#allocation7 + $0x8c] sm:$0xf]
    %v677 = vld [vmem:[#allocation7 + $0x90] sm:$0xf]
    %v678 = vld [vmem:[#allocation7 + $0x94] sm:$0xf]
    %v679 = vld [vmem:[#allocation7 + $0x98] sm:$0xf]
    %v680 = vld [vmem:[#allocation7 + $0x9c] sm:$0xf]
    %v681 = vld [vmem:[#allocation7 + $0xa0] sm:$0xf]
    %v682 = vld [vmem:[#allocation7 + $0xa4] sm:$0xf]
    %v683 = vld [vmem:[#allocation7 + $0xa8] sm:$0xf]
    %v684 = vld [vmem:[#allocation7 + $0xac] sm:$0xf]
    %v685 = vld [vmem:[#allocation7 + $0xb0] sm:$0xf]
    %v686 = vld [vmem:[#allocation7 + $0xb4] sm:$0xf]
    %v687 = vld [vmem:[#allocation7 + $0xb8] sm:$0xf]
    %v688 = vld [vmem:[#allocation7 + $0xbc] sm:$0xf]
    %v737 = vunpack.c.l.b16 %v641
    %v738 = vunpack.c.l.b16 %v642
    %v739 = vunpack.c.l.b16 %v643
    %v740 = vunpack.c.l.b16 %v644
    %v741 = vunpack.c.l.b16 %v645
    %v742 = vunpack.c.l.b16 %v646
    %v743 = vunpack.c.l.b16 %v647
    %v744 = vunpack.c.l.b16 %v648
    %v745 = vunpack.c.l.b16 %v649
    %v746 = vunpack.c.l.b16 %v650
    %v747 = vunpack.c.l.b16 %v651
    %v748 = vunpack.c.l.b16 %v652
    %v749 = vunpack.c.l.b16 %v653
    %v750 = vunpack.c.l.b16 %v654
    %v751 = vunpack.c.l.b16 %v655
    %v752 = vunpack.c.l.b16 %v656
    %v753 = vunpack.c.l.b16 %v657
    %v754 = vunpack.c.l.b16 %v658
    %v755 = vunpack.c.l.b16 %v659
    %v756 = vunpack.c.l.b16 %v660
    %v757 = vunpack.c.l.b16 %v661
    %v758 = vunpack.c.l.b16 %v662
    %v759 = vunpack.c.l.b16 %v663
    %v760 = vunpack.c.l.b16 %v664
    %v761 = vunpack.c.l.b16 %v665
    %v762 = vunpack.c.l.b16 %v666
    %v763 = vunpack.c.l.b16 %v667
    %v764 = vunpack.c.l.b16 %v668
    %v765 = vunpack.c.l.b16 %v669
    %v766 = vunpack.c.l.b16 %v670
    %v767 = vunpack.c.l.b16 %v671
    %v768 = vunpack.c.l.b16 %v672
    %v769 = vunpack.c.l.b16 %v673
    %v770 = vunpack.c.l.b16 %v674
    %v771 = vunpack.c.l.b16 %v675
    %v772 = vunpack.c.l.b16 %v676
    %v773 = vunpack.c.l.b16 %v677
    %v774 = vunpack.c.l.b16 %v678
    %v775 = vunpack.c.l.b16 %v679
    %v776 = vunpack.c.l.b16 %v680
    %v777 = vunpack.c.l.b16 %v681
    %v778 = vunpack.c.l.b16 %v682
    %v779 = vunpack.c.l.b16 %v683
    %v780 = vunpack.c.l.b16 %v684
    %v781 = vunpack.c.l.b16 %v685
    %v782 = vunpack.c.l.b16 %v686
    %v783 = vunpack.c.l.b16 %v687
    %v784 = vunpack.c.l.b16 %v688
    %v785 = vpack.c.b16 %v738, %v737
    %v786 = vpack.c.b16 %v740, %v739
    %v787 = vpack.c.b16 %v742, %v741
    %v788 = vpack.c.b16 %v744, %v743
    %v789 = vpack.c.b16 %v746, %v745
    %v790 = vpack.c.b16 %v748, %v747
    %v791 = vpack.c.b16 %v750, %v749
    %v792 = vpack.c.b16 %v752, %v751
    %v793 = vpack.c.b16 %v754, %v753
    %v794 = vpack.c.b16 %v756, %v755
    %v795 = vpack.c.b16 %v758, %v757
    %v796 = vpack.c.b16 %v760, %v759
    %v797 = vpack.c.b16 %v762, %v761
    %v798 = vpack.c.b16 %v764, %v763
    %v799 = vpack.c.b16 %v766, %v765
    %v800 = vpack.c.b16 %v768, %v767
    %v801 = vpack.c.b16 %v770, %v769
    %v802 = vpack.c.b16 %v772, %v771
    %v803 = vpack.c.b16 %v774, %v773
    %v804 = vpack.c.b16 %v776, %v775
    %v805 = vpack.c.b16 %v778, %v777
    %v806 = vpack.c.b16 %v780, %v779
    %v807 = vpack.c.b16 %v782, %v781
    %v808 = vpack.c.b16 %v784, %v783
    %833 = vmatprep.subr.bf16.mxu0 0
    %834 = vmatpush1.bf16.msra.mxu0 %v785
    %835 = vmatprep.subr.bf16.mxu0 0
    %836 = vmatpush1.bf16.msra.mxu0 %v786
    %837 = vmatprep.subr.bf16.mxu0 0
    %838 = vmatpush1.bf16.msra.mxu0 %v787
    %839 = vmatprep.subr.bf16.mxu0 0
    %840 = vmatpush1.bf16.msra.mxu0 %v788
    %841 = vmatprep.subr.bf16.mxu0 0
    %842 = vmatpush1.bf16.msra.mxu0 %v789
    %843 = vmatprep.subr.bf16.mxu0 0
    %844 = vmatpush1.bf16.msra.mxu0 %v790
    %845 = vmatprep.subr.bf16.mxu0 0
    %846 = vmatpush1.bf16.msra.mxu0 %v791
    %847 = vmatprep.subr.bf16.mxu0 0
    %848 = vmatpush1.bf16.msra.mxu0 %v792
    %849 = vmatprep.subr.bf16.mxu0 0
    %850 = vmatpush1.bf16.msra.mxu0 %v793
    %851 = vmatprep.subr.bf16.mxu0 0
    %852 = vmatpush1.bf16.msra.mxu0 %v794
    %853 = vmatprep.subr.bf16.mxu0 0
    %854 = vmatpush1.bf16.msra.mxu0 %v795
    %855 = vmatprep.subr.bf16.mxu0 0
    %856 = vmatpush1.bf16.msra.mxu0 %v796
    %857 = vmatprep.subr.bf16.mxu0 0
    %858 = vmatpush1.bf16.msra.mxu0 %v797
    %859 = vmatprep.subr.bf16.mxu0 0
    %860 = vmatpush1.bf16.msra.mxu0 %v798
    %861 = vmatprep.subr.bf16.mxu0 0
    %862 = vmatpush1.bf16.msra.mxu0 %v799
    %863 = vmatprep.subr.bf16.mxu0 0
    %864 = vmatpush1.bf16.msra.mxu0 %v800
    %865 = vmatprep.mubr.bf16.mxu0 %v91
    %866 = vmatmul.mubr.bf16.gmra.mrb[0].mxu0 %v90
    %v867 = vpop.f32.mrb[0].mxu0
    %v868 = vadd.f32 0.0, %v867
    %v869 = vpop.f32.mrb[0].mxu0
    %v870 = vpop.f32.mrb[0].mxu0
    %v871 = vadd.f32 0.0, %v870
    %v872 = vpop.f32.mrb[0].mxu0
    %873 = vdwg.mxu0
    %874 = vmatprep.subr.bf16.mxu0 0
    %875 = vmatpush1.bf16.msra.mxu0 %v801
    %876 = vmatprep.subr.bf16.mxu0 0
    %877 = vmatpush1.bf16.msra.mxu0 %v802
    %878 = vmatprep.subr.bf16.mxu0 0
    %879 = vmatpush1.bf16.msra.mxu0 %v803
    %880 = vmatprep.subr.bf16.mxu0 0
    %881 = vmatpush1.bf16.msra.mxu0 %v804
    %882 = vmatprep.subr.bf16.mxu0 0
    %883 = vmatpush1.bf16.msra.mxu0 %v805
    %884 = vmatprep.subr.bf16.mxu0 0
    %885 = vmatpush1.bf16.msra.mxu0 %v806
    %886 = vmatprep.subr.bf16.mxu0 0
    %887 = vmatpush1.bf16.msra.mxu0 %v807
    %888 = vmatprep.subr.bf16.mxu0 0
    %889 = vmatpush1.bf16.msra.mxu0 %v808
    %890 = vmatprep.subr.bf16.mxu0 0
    %891 = vmatpush1.bf16.msra.mxu0 0
    %892 = vmatprep.subr.bf16.mxu0 0
    %893 = vmatpush1.bf16.msra.mxu0 0
    %894 = vmatprep.subr.bf16.mxu0 0
    %895 = vmatpush1.bf16.msra.mxu0 0
    %896 = vmatprep.subr.bf16.mxu0 0
    %897 = vmatpush1.bf16.msra.mxu0 0
    %898 = vmatprep.subr.bf16.mxu0 0
    %899 = vmatpush1.bf16.msra.mxu0 0
    %900 = vmatprep.subr.bf16.mxu0 0
    %901 = vmatpush1.bf16.msra.mxu0 0
    %902 = vmatprep.subr.bf16.mxu0 0
    %903 = vmatpush1.bf16.msra.mxu0 0
    %904 = vmatprep.subr.bf16.mxu0 0
    %905 = vmatpush1.bf16.msra.mxu0 0
    %906 = vmatprep.mubr.bf16.mxu0 0
    %907 = vmatmul.mubr.bf16.gmra.mrb[0].mxu0 %v92
    %v908 = vpop.f32.mrb[0].mxu0
    %v909 = vadd.f32 %v868, %v908
    %v910 = vpop.f32.mrb[0].mxu0
    %v911 = vpop.f32.mrb[0].mxu0
    %v912 = vadd.f32 %v871, %v911
    %v913 = vpop.f32.mrb[0].mxu0
    %914 = vdwg.mxu0
    %v915 = vadd.f32 %v635, %v909
    %v916 = vadd.f32 %v638, %v912
    %917 = vst [vmem:[#allocation8] sm:$0xff] %v915
    %918 = vst [vmem:[#allocation8 + $0x8] sm:$0xff] %v916
    // Predicated region
    $region30: #{tpu_custom_call.1} parent=1 // pred_check
      _
    $region31: #{tpu_custom_call.1} parent=1 // pred_check_branch
      %920 = sbr.rel (0) target = $region33
    $region32: #{tpu_custom_call.1} parent=1 // pred_region
      %s922 = ssub.s32 256, 256
      %923 = vsyncadd [#allocation4], %s922
      %s924 = sshll.u32 [#allocation8], 4
      %s925 = int_to_ptr.vmem [resolvable:$true] %s924
      %930 = dma.vmem_to_hbm [thread:$0]  %s925, 256, %s4, [#allocation4], 128, 128, 8
    $region33: #{tpu_custom_call.1} parent=1 // pred_fallthru
      _
    // Predicated region
    $region34: #{tpu_custom_call.1} parent=1 // pred_check
      _
    $region35: #{tpu_custom_call.1} parent=1 // pred_check_branch
      %932 = sbr.rel (0) target = $region37
    $region36: #{tpu_custom_call.1} parent=1 // pred_region
      %933 = dma.done [#allocation4], 256
    $region37: #{tpu_custom_call.1} parent=1 // pred_fallthru
      _
    %934 = vsyncpa [#allocation3], 1
    %935 = vsyncpa [#allocation6], 1
    %936 = vsyncpa [#allocation4], 1

</llo_original>
